<compile_context>
chip_gen: v5e
topology: v5e:2x2
jax: 0.10.0
libtpu: 0.0.40
codegen_flags: <defaults>
</compile_context>

<pallas_src>
import math

import jax
import jax.numpy as jnp
from jax.experimental import pallas as pl
from jax.experimental.pallas import tpu as pltpu


def graph_conv_kernel(feat_ref, adj_ref, w_ref, b_ref, out_ref, cat_ref):
    # feat_ref: (M, D)    adj_ref: (M, M)  block-diagonal over the batch
    # w_ref:    (2D, Fp)  b_ref:   (1, Fp) out_ref: (M, Fp)
    # cat_ref:  (M, 2D)   VMEM scratch holding [features | agg_feats]
    D = feat_ref.shape[1]
    feat = feat_ref[...]                                          # (M, D)

    # MeanAggregator as a single block-diagonal matmul: agg = A_bd @ feat.
    agg = jnp.dot(adj_ref[...], feat, preferred_element_type=jnp.float32)

    # concat([features, agg], -1) materialized once in VMEM scratch.
    cat_ref[:, :D] = feat
    cat_ref[:, D:] = agg.astype(cat_ref.dtype)

    # Single K=2D projection replaces feat@W1 + agg@W2, then bias+ReLU epilogue.
    out = jnp.dot(cat_ref[...], w_ref[...], preferred_element_type=jnp.float32)
    out_ref[...] = jnp.maximum(out + b_ref[...], 0.0).astype(out_ref.dtype)


def prepare_graph_conv_params(weight, bias):
    """Pad (2D, F) weight / (F,) bias to a lane-dense F_pad (multiple of 128).

    Call ONCE at init time — keeps the pad out of the per-call hot path.
    Padded columns are zero, so ReLU(0 + 0) = 0 and they stay inert.
    """
    F = weight.shape[1]
    F_pad = ((F + 127) // 128) * 128
    if F_pad != F:
        weight = jnp.pad(weight, ((0, 0), (0, F_pad - F)))
        bias = jnp.pad(bias, (0, F_pad - F))
    return weight, bias.reshape(1, F_pad)


def _block_diag_adjacency(A):
    """(B, N, N) batched adjacency -> (B*N, B*N) block-diagonal adjacency."""
    B, N, _ = A.shape
    if B == 1:
        return A[0]
    idx = jnp.arange(B)
    A_bd = jnp.zeros((B, N, B, N), A.dtype).at[idx, :, idx, :].set(A)
    return A_bd.reshape(B * N, B * N)


def graph_conv(features, A, weight_padded, bias_padded, out_dim,
               trim_output=True):
    """features: (B,N,D) or (N,D) f32; A: (B,N,N) or (N,N);
    weight_padded/bias_padded: from prepare_graph_conv_params."""
    squeeze_batch = features.ndim == 2
    if squeeze_batch:
        features = features[None]
        A = A[None]

    B, N, D = features.shape
    M = B * N
    F_pad = weight_padded.shape[1]

    feat2 = features.reshape(M, D)          # free, contiguous wrapper reshape
    A_bd = _block_diag_adjacency(A)         # cheap at (B*N)^2 = 32x32

    out2 = pl.pallas_call(
        graph_conv_kernel,
        out_shape=jax.ShapeDtypeStruct((M, F_pad), features.dtype),
        in_specs=[
            pl.BlockSpec(memory_space=pltpu.MemorySpace.VMEM),   # features
            pl.BlockSpec(memory_space=pltpu.MemorySpace.VMEM),   # block-diag A
            pl.BlockSpec(memory_space=pltpu.MemorySpace.VMEM),   # weight (2D,Fp)
            pl.BlockSpec(memory_space=pltpu.MemorySpace.VMEM),   # bias (1,Fp)
        ],
        out_specs=pl.BlockSpec(memory_space=pltpu.MemorySpace.VMEM),
        scratch_shapes=[pltpu.VMEM((M, 2 * D), jnp.float32)],    # cat buffer
    )(feat2, A_bd, weight_padded, bias_padded)

    out = out2.reshape(B, N, F_pad)
    if trim_output:
        out = out[..., :out_dim]
    if squeeze_batch:
        out = out[0]
    return out


def _xavier_uniform(key, shape, dtype=jnp.float32):
    fan_in, fan_out = shape
    limit = math.sqrt(6.0 / (fan_in + fan_out))
    return jax.random.uniform(key, shape, dtype, minval=-limit, maxval=limit)


if __name__ == "__main__":
    key = jax.random.PRNGKey(0)
    k_feat, k_adj, k_w = jax.random.split(key, 3)

    B, N, in_dim, out_dim = 2, 16, 32, 32

    features = jax.random.normal(k_feat, (B, N, in_dim), dtype=jnp.float32)

    # row-normalized adjacency (MeanAggregator expects normalized A)
    raw = jax.random.uniform(k_adj, (B, N, N), dtype=jnp.float32)
    A = raw / jnp.sum(raw, axis=-1, keepdims=True)

    # parameters, matching nn.init.xavier_uniform_ / constant_(0)
    weight = _xavier_uniform(k_w, (in_dim * 2, out_dim))
    bias = jnp.zeros((out_dim,), dtype=jnp.float32)

    # one-time, out of the per-call hot path
    w_p, b_p = prepare_graph_conv_params(weight, bias)

    out = graph_conv(features, A, w_p, b_p, out_dim)
    out = jax.block_until_ready(out)

    # reference check in plain JAX
    agg_ref = jnp.einsum("bij,bjd->bid", A, features)
    cat_ref = jnp.concatenate([features, agg_ref], axis=-1)
    ref = jax.nn.relu(jnp.einsum("bnd,df->bnf", cat_ref, weight) + bias)
    assert out.shape == ref.shape
    assert jnp.allclose(out, ref, atol=1e-5, rtol=1e-5)

    print("KERNEL_OK")
</pallas_src>

<mosaic_0001>
module attributes {stable_mosaic.version = 11 : i64} {
  func.func @graph_conv_kernel(%arg0: memref<32x32xf32, #tpu.memory_space<vmem>>, %arg1: memref<32x32xf32, #tpu.memory_space<vmem>>, %arg2: memref<64x128xf32, #tpu.memory_space<vmem>>, %arg3: memref<1x128xf32, #tpu.memory_space<vmem>>, %arg4: memref<32x128xf32, #tpu.memory_space<vmem>>, %arg5: memref<32x64xf32, #tpu.memory_space<vmem>>) attributes {dimension_semantics = [], scalar_prefetch = 0 : i64, scratch_operands = 1 : i64, tpu.core_type = #tpu.core_type<tc>} {
    %c0 = arith.constant 0 : index
    %c0_0 = arith.constant 0 : index
    %0 = vector.load %arg0[%c0, %c0_0] : memref<32x32xf32, #tpu.memory_space<vmem>>, vector<32x32xf32>
    %c0_1 = arith.constant 0 : index
    %c0_2 = arith.constant 0 : index
    %1 = vector.load %arg1[%c0_1, %c0_2] : memref<32x32xf32, #tpu.memory_space<vmem>>, vector<32x32xf32>
    %cst = arith.constant dense<0.000000e+00> : vector<32x32xf32>
    %2 = tpu.matmul %1, %0, %cst {dimension_numbers = #tpu.dot_dimension_numbers<[1], [0], [0], [1], [0, 0, 1, 1], [], []>} : vector<32x32xf32>, vector<32x32xf32>, vector<32x32xf32> -> vector<32x32xf32>
    %c0_3 = arith.constant 0 : index
    %c0_4 = arith.constant 0 : index
    %3 = vector.load %arg5[%c0_3, %c0_4] : memref<32x64xf32, #tpu.memory_space<vmem>>, vector<32x32xf32>
    tpu.vector_store %arg5[%c0_3, %c0_4], %0 {strides = array<i32>} : memref<32x64xf32, #tpu.memory_space<vmem>>, vector<32x32xf32>,
    %c0_5 = arith.constant 0 : index
    %c32 = arith.constant 32 : index
    %4 = vector.load %arg5[%c0_5, %c32] : memref<32x64xf32, #tpu.memory_space<vmem>>, vector<32x32xf32>
    tpu.vector_store %arg5[%c0_5, %c32], %2 {strides = array<i32>} : memref<32x64xf32, #tpu.memory_space<vmem>>, vector<32x32xf32>,
    %c0_6 = arith.constant 0 : index
    %c0_7 = arith.constant 0 : index
    %5 = vector.load %arg5[%c0_6, %c0_7] : memref<32x64xf32, #tpu.memory_space<vmem>>, vector<32x64xf32>
    %c0_8 = arith.constant 0 : index
    %c0_9 = arith.constant 0 : index
    %6 = vector.load %arg2[%c0_8, %c0_9] : memref<64x128xf32, #tpu.memory_space<vmem>>, vector<64x128xf32>
    %cst_10 = arith.constant dense<0.000000e+00> : vector<32x128xf32>
    %7 = tpu.matmul %5, %6, %cst_10 {dimension_numbers = #tpu.dot_dimension_numbers<[1], [0], [0], [1], [0, 0, 1, 1], [], []>} : vector<32x64xf32>, vector<64x128xf32>, vector<32x128xf32> -> vector<32x128xf32>
    %c0_11 = arith.constant 0 : index
    %c0_12 = arith.constant 0 : index
    %8 = vector.load %arg3[%c0_11, %c0_12] : memref<1x128xf32, #tpu.memory_space<vmem>>, vector<1x128xf32>
    %9 = vector.broadcast %8 : vector<1x128xf32> to vector<32x128xf32>
    %10 = arith.addf %7, %9 : vector<32x128xf32>
    %cst_13 = arith.constant 0.000000e+00 : f32
    %11 = vector.broadcast %cst_13 : f32 to vector<32x128xf32>
    %12 = arith.maximumf %10, %11 : vector<32x128xf32>
    %c0_14 = arith.constant 0 : index
    %c0_15 = arith.constant 0 : index
    %13 = vector.load %arg4[%c0_14, %c0_15] : memref<32x128xf32, #tpu.memory_space<vmem>>, vector<32x128xf32>
    tpu.vector_store %arg4[%c0_14, %c0_15], %12 {strides = array<i32>} : memref<32x128xf32, #tpu.memory_space<vmem>>, vector<32x128xf32>,
    return
  }
}

</mosaic_0001>

<llo_original>
// kernel: tpu_custom_call.1
$region0: #{tpu_custom_call.1}
  #allocation0 [shape = 'u32[]', space=smem, size = 0x4, offset = 0x4, fixed_abs, tag = 'smem constant byte address 0x4 - core index']
  #allocation1 [shape = 'u32[72,128]{1,0:T(1,128)}', space=vmem, size = 0x9000, scoped, tag = 'internal scratch']
  #allocation2 [shape = 'f32[32,64]{1,0:T(8,128)}', space=vmem, size = 0x4000, scoped, tag = 'scratch operand']
  %s0 = inlined_call_operand.hbm [shape: f32[32,32], index: 0, kind: input, shape index: {}]
  %s1 = inlined_call_operand.hbm [shape: f32[32,32], index: 1, kind: input, shape index: {}]
  %s2 = inlined_call_operand.hbm [shape: f32[64,128], index: 2, kind: input, shape index: {}]
  %s3 = inlined_call_operand.vmem [shape: f32[1,128], index: 3, kind: input, shape index: {}]
  %s4 = inlined_call_operand.hbm [shape: f32[32,128], index: 4, kind: output, shape index: {}]
  %s5 = sld [smem:[#allocation0]]
  $region38: #{tpu_custom_call.1} parent=0
    _
  %s7 = ssub.s32 1, %s5
  %s8 = scalar_select 0, %s7, %s5
  $region1: #{tpu_custom_call.1} parent=0
    #allocation3 [shape = 'u8[16384]{0}', space=vmem, size = 0x4000, scoped, tag = 'input window, operand 0, single buffered']
    #allocation4 [shape = 's32[1]{0}', space=sflag, size = 0x4, scoped, tag = 'scoped memory for tpu_custom_call.1']
    #allocation5 [shape = 's32[1]{0}', space=sflag, size = 0x4, scoped, tag = 'scoped memory for tpu_custom_call.1']
    #allocation6 [shape = 'u8[16384]{0}', space=vmem, size = 0x4000, scoped, tag = 'input window, operand 1, single buffered']
    #allocation7 [shape = 's32[1]{0}', space=sflag, size = 0x4, scoped, tag = 'scoped memory for tpu_custom_call.1']
    #allocation8 [shape = 'u8[32768]{0}', space=vmem, size = 0x8000, scoped, tag = 'input window, operand 2, single buffered']
    #allocation9 [shape = 'u8[16384]{0}', space=vmem, size = 0x4000, scoped, tag = 'output window, operand 0, single buffered']
    %9 = vsyncpa [#allocation4], 0
    %10 = vsyncpa [#allocation7], 0
    %11 = vsyncpa [#allocation5], 0
    // Predicated region
    $region2: #{tpu_custom_call.1} parent=1 // pred_check
      _
    $region3: #{tpu_custom_call.1} parent=1 // pred_check_branch
      %13 = sbr.rel (0) target = $region5
    $region4: #{tpu_custom_call.1} parent=1 // pred_region
      %15 = vsyncadd [#allocation4], 0
      %s16 = sshll.u32 %s0, 4
      %s17 = int_to_ptr.hbm [resolvable:$true] %s16
      %s18 = sshll.u32 [#allocation3], 4
      %s19 = int_to_ptr.vmem [resolvable:$true] %s18
      %24 = dma.hbm_to_vmem [thread:$0]  %s17, 512, %s19, [#allocation4], 128, 128, 8
    $region5: #{tpu_custom_call.1} parent=1 // pred_fallthru
      _
    // Predicated region
    $region6: #{tpu_custom_call.1} parent=1 // pred_check
      _
    $region7: #{tpu_custom_call.1} parent=1 // pred_check_branch
      %26 = sbr.rel (0) target = $region9
    $region8: #{tpu_custom_call.1} parent=1 // pred_region
      %28 = vsyncadd [#allocation7], 0
      %s29 = sshll.u32 %s1, 4
      %s30 = int_to_ptr.hbm [resolvable:$true] %s29
      %s31 = sshll.u32 [#allocation6], 4
      %s32 = int_to_ptr.vmem [resolvable:$true] %s31
      %37 = dma.hbm_to_vmem [thread:$0]  %s30, 512, %s32, [#allocation7], 128, 128, 8
    $region9: #{tpu_custom_call.1} parent=1 // pred_fallthru
      _
    // Predicated region
    $region10: #{tpu_custom_call.1} parent=1 // pred_check
      _
    $region11: #{tpu_custom_call.1} parent=1 // pred_check_branch
      %39 = sbr.rel (0) target = $region13
    $region12: #{tpu_custom_call.1} parent=1 // pred_region
      %41 = vsyncadd [#allocation7], 0
      %s42 = sshll.u32 %s2, 4
      %s43 = int_to_ptr.hbm [resolvable:$true] %s42
      %s44 = sshll.u32 [#allocation8], 4
      %s45 = int_to_ptr.vmem [resolvable:$true] %s44
      %50 = dma.hbm_to_vmem [thread:$0]  %s43, 1024, %s45, [#allocation7], 128, 128, 8
    $region13: #{tpu_custom_call.1} parent=1 // pred_fallthru
      _
    // Predicated region
    $region14: #{tpu_custom_call.1} parent=1 // pred_check
      _
    $region15: #{tpu_custom_call.1} parent=1 // pred_check_branch
      %52 = sbr.rel (0) target = $region17
    $region16: #{tpu_custom_call.1} parent=1 // pred_region
      _
    $region17: #{tpu_custom_call.1} parent=1 // pred_fallthru
      _
    // Predicated region
    $region18: #{tpu_custom_call.1} parent=1 // pred_check
      _
    $region19: #{tpu_custom_call.1} parent=1 // pred_check_branch
      %54 = sbr.rel (0) target = $region21
    $region20: #{tpu_custom_call.1} parent=1 // pred_region
      %56 = dma.done [#allocation4], 512
    $region21: #{tpu_custom_call.1} parent=1 // pred_fallthru
      _
    // Predicated region
    $region22: #{tpu_custom_call.1} parent=1 // pred_check
      _
    $region23: #{tpu_custom_call.1} parent=1 // pred_check_branch
      %58 = sbr.rel (0) target = $region25
    $region24: #{tpu_custom_call.1} parent=1 // pred_region
      %60 = dma.done [#allocation7], 512
    $region25: #{tpu_custom_call.1} parent=1 // pred_fallthru
      _
    // Predicated region
    $region26: #{tpu_custom_call.1} parent=1 // pred_check
      _
    $region27: #{tpu_custom_call.1} parent=1 // pred_check_branch
      %62 = sbr.rel (0) target = $region29
    $region28: #{tpu_custom_call.1} parent=1 // pred_region
      %64 = dma.done [#allocation7], 1024
    $region29: #{tpu_custom_call.1} parent=1 // pred_fallthru
      _
    %v65 = vld [vmem:[#allocation3] sm:$0xff]
    %v66 = vld [vmem:[#allocation3 + $0x8] sm:$0xff]
    %v67 = vld [vmem:[#allocation3 + $0x10] sm:$0xff]
    %v68 = vld [vmem:[#allocation3 + $0x18] sm:$0xff]
    %v69 = vld [vmem:[#allocation6] sm:$0xff]
    %v70 = vld [vmem:[#allocation6 + $0x8] sm:$0xff]
    %v71 = vld [vmem:[#allocation6 + $0x10] sm:$0xff]
    %v72 = vld [vmem:[#allocation6 + $0x18] sm:$0xff]
    %vm73 = vcmask 261120
    %v75 = vsel %vm73, %v69, 0
    %v78 = vsel %vm73, %v70, 0
    %v81 = vsel %vm73, %v71, 0
    %v84 = vsel %vm73, %v72, 0
    %86 = vmatpush.msra.mxu0 0.0
    %87 = vmatpush.msra.mxu0 0.0
    %88 = vmatpush.msra.mxu0 0.0
    %89 = vmatpush.msra.mxu0 0.0
    %90 = vmatpush.msra.mxu0 0.0
    %91 = vmatpush.msra.mxu0 0.0
    %92 = vmatpush.msra.mxu0 0.0
    %93 = vmatpush.msra.mxu0 0.0
    %94 = vmatpush.msra.mxu0 0.0
    %95 = vmatpush.msra.mxu0 0.0
    %96 = vmatpush.msra.mxu0 0.0
    %97 = vmatpush.msra.mxu0 0.0
    %98 = vmatpush.msra.mxu0 %v68
    %99 = vmatpush.msra.mxu0 %v67
    %100 = vmatpush.msra.mxu0 %v66
    %101 = vmatpush.msra.mxu0 %v65
    %102 = vmatmul.f32.gmra.mxu0 %v75
    %v103 = vpop.f32.mrf.mxu0
    %v104 = vadd.f32 0.0, %v103
    %105 = vmatmul.f32.gmra.mxu0 %v78
    %v106 = vpop.f32.mrf.mxu0
    %v107 = vadd.f32 0.0, %v106
    %108 = vmatmul.f32.gmra.mxu0 %v81
    %v109 = vpop.f32.mrf.mxu0
    %v110 = vadd.f32 0.0, %v109
    %111 = vmatmul.f32.gmra.mxu0 %v84
    %v112 = vpop.f32.mrf.mxu0
    %v113 = vadd.f32 0.0, %v112
    %114 = vdwg.mxu0
    %115 = vst.msk [vmem:[#allocation2] sm:$0xff] %vm73, %v65
    %116 = vst.msk [vmem:[#allocation2 + $0x8] sm:$0xff] %vm73, %v66
    %117 = vst.msk [vmem:[#allocation2 + $0x10] sm:$0xff] %vm73, %v67
    %118 = vst.msk [vmem:[#allocation2 + $0x18] sm:$0xff] %vm73, %v68
    %123 = vrot.lane.b32.xlu0 %v104, 32
    %v124 = vpop.permute.xlu0 %123
    %125 = vrot.lane.b32.xlu0 %v107, 32
    %v126 = vpop.permute.xlu0 %125
    %127 = vrot.lane.b32.xlu0 %v110, 32
    %v128 = vpop.permute.xlu0 %127
    %129 = vrot.lane.b32.xlu0 %v113, 32
    %v130 = vpop.permute.xlu0 %129
    %vm135 = vcmask 523520
    %136 = vst.msk [vmem:[#allocation2] sm:$0xff] %vm135, %v124
    %137 = vst.msk [vmem:[#allocation2 + $0x8] sm:$0xff] %vm135, %v126
    %138 = vst.msk [vmem:[#allocation2 + $0x10] sm:$0xff] %vm135, %v128
    %139 = vst.msk [vmem:[#allocation2 + $0x18] sm:$0xff] %vm135, %v130
    %v140 = vld [vmem:[#allocation2] sm:$0xff]
    %v141 = vld [vmem:[#allocation2 + $0x8] sm:$0xff]
    %v142 = vld [vmem:[#allocation2 + $0x10] sm:$0xff]
    %v143 = vld [vmem:[#allocation2 + $0x18] sm:$0xff]
    %v144 = vld [vmem:[#allocation8] sm:$0xff]
    %v145 = vld [vmem:[#allocation8 + $0x8] sm:$0xff]
    %v146 = vld [vmem:[#allocation8 + $0x10] sm:$0xff]
    %v147 = vld [vmem:[#allocation8 + $0x18] sm:$0xff]
    %v148 = vld [vmem:[#allocation8 + $0x20] sm:$0xff]
    %v149 = vld [vmem:[#allocation8 + $0x28] sm:$0xff]
    %v150 = vld [vmem:[#allocation8 + $0x30] sm:$0xff]
    %v151 = vld [vmem:[#allocation8 + $0x38] sm:$0xff]
    %v152 = vld [vmem:[%s3] sm:$0x1]
    %v154 = vperm.slane %v152, 0
    %vm156 = vcmask 523264
    %v158 = vsel %vm156, %v140, 0
    %v161 = vsel %vm156, %v141, 0
    %v164 = vsel %vm156, %v142, 0
    %v167 = vsel %vm156, %v143, 0
    %169 = vmatpush.msra.mxu0 0.0
    %170 = vmatpush.msra.mxu0 0.0
    %171 = vmatpush.msra.mxu0 0.0
    %172 = vmatpush.msra.mxu0 0.0
    %173 = vmatpush.msra.mxu0 0.0
    %174 = vmatpush.msra.mxu0 0.0
    %175 = vmatpush.msra.mxu0 0.0
    %176 = vmatpush.msra.mxu0 0.0
    %177 = vmatpush.msra.mxu0 %v151
    %178 = vmatpush.msra.mxu0 %v150
    %179 = vmatpush.msra.mxu0 %v149
    %180 = vmatpush.msra.mxu0 %v148
    %181 = vmatpush.msra.mxu0 %v147
    %182 = vmatpush.msra.mxu0 %v146
    %183 = vmatpush.msra.mxu0 %v145
    %184 = vmatpush.msra.mxu0 %v144
    %185 = vmatmul.f32.gmra.mxu0 %v158
    %v186 = vpop.f32.mrf.mxu0
    %v187 = vadd.f32 %v154, %v186
    %188 = vmatmul.f32.gmra.mxu0 %v161
    %v189 = vpop.f32.mrf.mxu0
    %v190 = vadd.f32 %v154, %v189
    %191 = vmatmul.f32.gmra.mxu0 %v164
    %v192 = vpop.f32.mrf.mxu0
    %v193 = vadd.f32 %v154, %v192
    %194 = vmatmul.f32.gmra.mxu0 %v167
    %v195 = vpop.f32.mrf.mxu0
    %v196 = vadd.f32 %v154, %v195
    %197 = vdwg.mxu0
    %v198 = vmax.f32 %v187, 0.0
    %v199 = vmax.f32 %v190, 0.0
    %v200 = vmax.f32 %v193, 0.0
    %v201 = vmax.f32 %v196, 0.0
    %202 = vst [vmem:[#allocation9] sm:$0xff] %v198
    %203 = vst [vmem:[#allocation9 + $0x8] sm:$0xff] %v199
    %204 = vst [vmem:[#allocation9 + $0x10] sm:$0xff] %v200
    %205 = vst [vmem:[#allocation9 + $0x18] sm:$0xff] %v201
    // Predicated region
    $region30: #{tpu_custom_call.1} parent=1 // pred_check
      _
    $region31: #{tpu_custom_call.1} parent=1 // pred_check_branch
      %207 = sbr.rel (0) target = $region33
    $region32: #{tpu_custom_call.1} parent=1 // pred_region
      %209 = vsyncadd [#allocation5], 0
      %s210 = sshll.u32 [#allocation9], 4
      %s211 = int_to_ptr.vmem [resolvable:$true] %s210
      %s212 = sshll.u32 %s4, 4
      %s213 = int_to_ptr.hbm [resolvable:$true] %s212
      %218 = dma.vmem_to_hbm [thread:$0]  %s211, 512, %s213, [#allocation5], 128, 128, 8
    $region33: #{tpu_custom_call.1} parent=1 // pred_fallthru
      _
    // Predicated region
    $region34: #{tpu_custom_call.1} parent=1 // pred_check
      _
    $region35: #{tpu_custom_call.1} parent=1 // pred_check_branch
      %220 = sbr.rel (0) target = $region37
    $region36: #{tpu_custom_call.1} parent=1 // pred_region
      %222 = dma.done [#allocation5], 512
    $region37: #{tpu_custom_call.1} parent=1 // pred_fallthru
      _
    %223 = vsyncpa [#allocation4], 1
    %224 = vsyncpa [#allocation7], 1
    %225 = vsyncpa [#allocation5], 1

</llo_original>
